<compile_context>
chip_gen: v7x
topology: tpu7x:2x2x1
jax: 0.10.0
libtpu: 0.0.40
codegen_flags: <defaults>
</compile_context>

<pallas_src>
import numpy as np
import jax
import jax.numpy as jnp
from jax.experimental import pallas as pl
from jax.experimental.pallas import tpu as pltpu

FILTER_WIDTH = 13          # OneGaussianLambdaFilter(filter_width=13)
NSIG = 10.0
LAMBDA = 0.25
PAD = FILTER_WIDTH // 2    # int(13 / 2) == 6  ->  "same" output size


def _gaussian_kernel_1d(kernel_len=FILTER_WIDTH, nsig=NSIG):
    """Deterministic replica of cv2.getGaussianKernel(kernel_len, nsig)."""
    ax = np.arange(kernel_len, dtype=np.float64) - (kernel_len - 1) / 2.0
    k1 = np.exp(-(ax ** 2) / (2.0 * nsig ** 2))
    k1 /= k1.sum()
    return k1


_K1 = _gaussian_kernel_1d()                       # 13 taps, sums to 1
K1 = [float(v) for v in _K1]                      # row-pass taps (constants)
K1_LAMBDA = [float(LAMBDA * v) for v in _K1]      # column-pass taps * lambda_


def one_gaussian_lambda_filter(x):
    """x: (N, 3, H, W) float32 -> (N, 3, H, W) float32 residual."""
    N, C, H, W = x.shape
    assert C == 3, "Gaussian_kernel.forward filters exactly channels 0..2"
    Hp = H + 2 * PAD            # padded height
    Wp = W + 2 * PAD            # per-channel padded window width
    L = C * Wp                  # packed working width (all channels, lanes)
    Lp = L + 2 * PAD            # slab width incl. outer zero margins

    xf = x.reshape(N * C, H, W).astype(jnp.float32)

    def kernel(x_ref, o_ref, pad_ref, row_ref):
        # x_ref/o_ref: (C, H, W) VMEM.  pad_ref: (Hp, Lp).  row_ref: (Hp, L).
        # Channel k's zero-padded window lives at
        #   pad_ref[:, PAD + k*Wp : PAD + (k+1)*Wp],
        # its interior (the raw image) at
        #   pad_ref[PAD:PAD+H, 2*PAD + k*Wp : 2*PAD + k*Wp + W].
        pad_ref[...] = jnp.zeros_like(pad_ref)
        for k in range(C):
            c0 = 2 * PAD + k * Wp
            pad_ref[PAD:PAD + H, c0:c0 + W] = x_ref[k, :, :]

        # Row (W-direction) pass: 13 uniform, full-width lane-shifted slices.
        #   row[r, p] = sum_v K1[v] * pad[r, p + v],  p in [0, L)
        acc = K1[0] * pad_ref[:, 0:L]
        for v in range(1, FILTER_WIDTH):
            acc = acc + K1[v] * pad_ref[:, v:v + L]
        row_ref[...] = acc

        # Column (H-direction) pass with lambda_ folded into the taps:
        #   blur_l[i, p] = lambda_ * sum_u K1[u] * row[i + u, p]
        blur_l = K1_LAMBDA[0] * row_ref[0:H, :]
        for u in range(1, FILTER_WIDTH):
            blur_l = blur_l + K1_LAMBDA[u] * row_ref[u:u + H, :]

        # Residual per channel: res = x - lambda_ * gaussian(x)
        for k in range(C):
            c0 = k * Wp + PAD
            o_ref[k, :, :] = x_ref[k, :, :] - blur_l[:, c0:c0 + W]

    out = pl.pallas_call(
        kernel,
        out_shape=jax.ShapeDtypeStruct((N * C, H, W), jnp.float32),
        grid_spec=pltpu.PrefetchScalarGridSpec(
            num_scalar_prefetch=0,
            grid=(N,),                                    # one step per image
            in_specs=[pl.BlockSpec((C, H, W), lambda n: (n, 0, 0))],
            out_specs=pl.BlockSpec((C, H, W), lambda n: (n, 0, 0)),
            scratch_shapes=[pltpu.VMEM((Hp, Lp), jnp.float32),   # padded slab
                            pltpu.VMEM((Hp, L), jnp.float32)]),  # row pass
        compiler_params=pltpu.CompilerParams(
            dimension_semantics=("parallel",),
            vmem_limit_bytes=32 * 1024 * 1024),
    )(xf)

    return out.reshape(N, C, H, W)


if __name__ == "__main__":
    key = jax.random.PRNGKey(0)
    # Small shape consistent with the module's forward: N=2, C=3, H=W=16
    x = jax.random.normal(key, (2, 3, 16, 16), dtype=jnp.float32)

    y = one_gaussian_lambda_filter(x)
    y = jax.block_until_ready(y)

    # float64 numpy reference: direct 13x13 cross-correlation, zero "same" pad
    x_np = np.asarray(x, dtype=np.float64)
    k2 = np.outer(_K1, _K1)
    xpad = np.pad(x_np, ((0, 0), (0, 0), (PAD, PAD), (PAD, PAD)))
    conv = np.zeros_like(x_np)
    H, W = x_np.shape[-2:]
    for u in range(FILTER_WIDTH):
        for v in range(FILTER_WIDTH):
            conv += k2[u, v] * xpad[:, :, u:u + H, v:v + W]
    ref = x_np - LAMBDA * conv

    np.testing.assert_allclose(np.asarray(y, dtype=np.float64), ref,
                               rtol=1e-5, atol=1e-5)
    print("KERNEL_OK")
</pallas_src>

<mosaic_0001>
module attributes {stable_mosaic.version = 11 : i64} {
  func.func @kernel(%arg0: i32, %arg1: memref<3x16x16xf32, #tpu.memory_space<vmem>>, %arg2: memref<3x16x16xf32, #tpu.memory_space<vmem>>, %arg3: memref<28x96xf32, #tpu.memory_space<vmem>>, %arg4: memref<28x84xf32, #tpu.memory_space<vmem>>) attributes {dimension_semantics = [#tpu.dimension_semantics<parallel>], iteration_bounds = array<i64: 2>, scalar_prefetch = 0 : i64, scratch_operands = 2 : i64, tpu.core_type = #tpu.core_type<tc>, window_params = [{transform_indices = @transform_0, window_bounds = array<i64: 3, 16, 16>}, {transform_indices = @transform_1, window_bounds = array<i64: 3, 16, 16>}]} {
    %cst = arith.constant 0.000000e+00 : f32
    %0 = vector.broadcast %cst : f32 to vector<28x96xf32>
    %c0 = arith.constant 0 : index
    %c0_0 = arith.constant 0 : index
    %1 = vector.load %arg3[%c0, %c0_0] : memref<28x96xf32, #tpu.memory_space<vmem>>, vector<28x96xf32>
    tpu.vector_store %arg3[%c0, %c0_0], %0 {strides = array<i32>} : memref<28x96xf32, #tpu.memory_space<vmem>>, vector<28x96xf32>,
    %c0_1 = arith.constant 0 : index
    %c0_2 = arith.constant 0 : index
    %c0_3 = arith.constant 0 : index
    %2 = vector.load %arg1[%c0_1, %c0_2, %c0_3] : memref<3x16x16xf32, #tpu.memory_space<vmem>>, vector<1x16x16xf32>
    %3 = vector.shape_cast %2 : vector<1x16x16xf32> to vector<16x16xf32>
    %c6 = arith.constant 6 : index
    %c12 = arith.constant 12 : index
    %4 = vector.load %arg3[%c6, %c12] : memref<28x96xf32, #tpu.memory_space<vmem>>, vector<16x16xf32>
    tpu.vector_store %arg3[%c6, %c12], %3 {strides = array<i32>} : memref<28x96xf32, #tpu.memory_space<vmem>>, vector<16x16xf32>,
    %c1 = arith.constant 1 : index
    %c0_4 = arith.constant 0 : index
    %c0_5 = arith.constant 0 : index
    %5 = vector.load %arg1[%c1, %c0_4, %c0_5] : memref<3x16x16xf32, #tpu.memory_space<vmem>>, vector<1x16x16xf32>
    %6 = vector.shape_cast %5 : vector<1x16x16xf32> to vector<16x16xf32>
    %c6_6 = arith.constant 6 : index
    %c40 = arith.constant 40 : index
    %7 = vector.load %arg3[%c6_6, %c40] : memref<28x96xf32, #tpu.memory_space<vmem>>, vector<16x16xf32>
    tpu.vector_store %arg3[%c6_6, %c40], %6 {strides = array<i32>} : memref<28x96xf32, #tpu.memory_space<vmem>>, vector<16x16xf32>,
    %c2 = arith.constant 2 : index
    %c0_7 = arith.constant 0 : index
    %c0_8 = arith.constant 0 : index
    %8 = vector.load %arg1[%c2, %c0_7, %c0_8] : memref<3x16x16xf32, #tpu.memory_space<vmem>>, vector<1x16x16xf32>
    %9 = vector.shape_cast %8 : vector<1x16x16xf32> to vector<16x16xf32>
    %c6_9 = arith.constant 6 : index
    %c68 = arith.constant 68 : index
    %10 = vector.load %arg3[%c6_9, %c68] : memref<28x96xf32, #tpu.memory_space<vmem>>, vector<16x16xf32>
    tpu.vector_store %arg3[%c6_9, %c68], %9 {strides = array<i32>} : memref<28x96xf32, #tpu.memory_space<vmem>>, vector<16x16xf32>,
    %c0_10 = arith.constant 0 : index
    %c0_11 = arith.constant 0 : index
    %11 = vector.load %arg3[%c0_10, %c0_11] : memref<28x96xf32, #tpu.memory_space<vmem>>, vector<28x84xf32>
    %cst_12 = arith.constant 0.0687794387 : f32
    %12 = vector.broadcast %cst_12 : f32 to vector<28x84xf32>
    %13 = arith.mulf %12, %11 : vector<28x84xf32>
    %c0_13 = arith.constant 0 : index
    %c1_14 = arith.constant 1 : index
    %14 = vector.load %arg3[%c0_13, %c1_14] : memref<28x96xf32, #tpu.memory_space<vmem>>, vector<28x84xf32>
    %cst_15 = arith.constant 0.0726682767 : f32
    %15 = vector.broadcast %cst_15 : f32 to vector<28x84xf32>
    %16 = arith.mulf %15, %14 : vector<28x84xf32>
    %17 = arith.addf %13, %16 : vector<28x84xf32>
    %c0_16 = arith.constant 0 : index
    %c2_17 = arith.constant 2 : index
    %18 = vector.load %arg3[%c0_16, %c2_17] : memref<28x96xf32, #tpu.memory_space<vmem>>, vector<28x84xf32>
    %cst_18 = arith.constant 0.0760130361 : f32
    %19 = vector.broadcast %cst_18 : f32 to vector<28x84xf32>
    %20 = arith.mulf %19, %18 : vector<28x84xf32>
    %21 = arith.addf %17, %20 : vector<28x84xf32>
    %c0_19 = arith.constant 0 : index
    %c3 = arith.constant 3 : index
    %22 = vector.load %arg3[%c0_19, %c3] : memref<28x96xf32, #tpu.memory_space<vmem>>, vector<28x84xf32>
    %cst_20 = arith.constant 0.0787205994 : f32
    %23 = vector.broadcast %cst_20 : f32 to vector<28x84xf32>
    %24 = arith.mulf %23, %22 : vector<28x84xf32>
    %25 = arith.addf %21, %24 : vector<28x84xf32>
    %c0_21 = arith.constant 0 : index
    %c4 = arith.constant 4 : index
    %26 = vector.load %arg3[%c0_21, %c4] : memref<28x96xf32, #tpu.memory_space<vmem>>, vector<28x84xf32>
    %cst_22 = arith.constant 0.0807134211 : f32
    %27 = vector.broadcast %cst_22 : f32 to vector<28x84xf32>
    %28 = arith.mulf %27, %26 : vector<28x84xf32>
    %29 = arith.addf %25, %28 : vector<28x84xf32>
    %c0_23 = arith.constant 0 : index
    %c5 = arith.constant 5 : index
    %30 = vector.load %arg3[%c0_23, %c5] : memref<28x96xf32, #tpu.memory_space<vmem>>, vector<28x84xf32>
    %cst_24 = arith.constant 0.0819332525 : f32
    %31 = vector.broadcast %cst_24 : f32 to vector<28x84xf32>
    %32 = arith.mulf %31, %30 : vector<28x84xf32>
    %33 = arith.addf %29, %32 : vector<28x84xf32>
    %c0_25 = arith.constant 0 : index
    %c6_26 = arith.constant 6 : index
    %34 = vector.load %arg3[%c0_25, %c6_26] : memref<28x96xf32, #tpu.memory_space<vmem>>, vector<28x84xf32>
    %cst_27 = arith.constant 0.0823439434 : f32
    %35 = vector.broadcast %cst_27 : f32 to vector<28x84xf32>
    %36 = arith.mulf %35, %34 : vector<28x84xf32>
    %37 = arith.addf %33, %36 : vector<28x84xf32>
    %c0_28 = arith.constant 0 : index
    %c7 = arith.constant 7 : index
    %38 = vector.load %arg3[%c0_28, %c7] : memref<28x96xf32, #tpu.memory_space<vmem>>, vector<28x84xf32>
    %cst_29 = arith.constant 0.0819332525 : f32
    %39 = vector.broadcast %cst_29 : f32 to vector<28x84xf32>
    %40 = arith.mulf %39, %38 : vector<28x84xf32>
    %41 = arith.addf %37, %40 : vector<28x84xf32>
    %c0_30 = arith.constant 0 : index
    %c8 = arith.constant 8 : index
    %42 = vector.load %arg3[%c0_30, %c8] : memref<28x96xf32, #tpu.memory_space<vmem>>, vector<28x84xf32>
    %cst_31 = arith.constant 0.0807134211 : f32
    %43 = vector.broadcast %cst_31 : f32 to vector<28x84xf32>
    %44 = arith.mulf %43, %42 : vector<28x84xf32>
    %45 = arith.addf %41, %44 : vector<28x84xf32>
    %c0_32 = arith.constant 0 : index
    %c9 = arith.constant 9 : index
    %46 = vector.load %arg3[%c0_32, %c9] : memref<28x96xf32, #tpu.memory_space<vmem>>, vector<28x84xf32>
    %cst_33 = arith.constant 0.0787205994 : f32
    %47 = vector.broadcast %cst_33 : f32 to vector<28x84xf32>
    %48 = arith.mulf %47, %46 : vector<28x84xf32>
    %49 = arith.addf %45, %48 : vector<28x84xf32>
    %c0_34 = arith.constant 0 : index
    %c10 = arith.constant 10 : index
    %50 = vector.load %arg3[%c0_34, %c10] : memref<28x96xf32, #tpu.memory_space<vmem>>, vector<28x84xf32>
    %cst_35 = arith.constant 0.0760130361 : f32
    %51 = vector.broadcast %cst_35 : f32 to vector<28x84xf32>
    %52 = arith.mulf %51, %50 : vector<28x84xf32>
    %53 = arith.addf %49, %52 : vector<28x84xf32>
    %c0_36 = arith.constant 0 : index
    %c11 = arith.constant 11 : index
    %54 = vector.load %arg3[%c0_36, %c11] : memref<28x96xf32, #tpu.memory_space<vmem>>, vector<28x84xf32>
    %cst_37 = arith.constant 0.0726682767 : f32
    %55 = vector.broadcast %cst_37 : f32 to vector<28x84xf32>
    %56 = arith.mulf %55, %54 : vector<28x84xf32>
    %57 = arith.addf %53, %56 : vector<28x84xf32>
    %c0_38 = arith.constant 0 : index
    %c12_39 = arith.constant 12 : index
    %58 = vector.load %arg3[%c0_38, %c12_39] : memref<28x96xf32, #tpu.memory_space<vmem>>, vector<28x84xf32>
    %cst_40 = arith.constant 0.0687794387 : f32
    %59 = vector.broadcast %cst_40 : f32 to vector<28x84xf32>
    %60 = arith.mulf %59, %58 : vector<28x84xf32>
    %61 = arith.addf %57, %60 : vector<28x84xf32>
    %c0_41 = arith.constant 0 : index
    %c0_42 = arith.constant 0 : index
    %62 = vector.load %arg4[%c0_41, %c0_42] : memref<28x84xf32, #tpu.memory_space<vmem>>, vector<28x84xf32>
    tpu.vector_store %arg4[%c0_41, %c0_42], %61 {strides = array<i32>} : memref<28x84xf32, #tpu.memory_space<vmem>>, vector<28x84xf32>,
    %c0_43 = arith.constant 0 : index
    %c0_44 = arith.constant 0 : index
    %63 = vector.load %arg4[%c0_43, %c0_44] : memref<28x84xf32, #tpu.memory_space<vmem>>, vector<16x84xf32>
    %cst_45 = arith.constant 0.0171948597 : f32
    %64 = vector.broadcast %cst_45 : f32 to vector<16x84xf32>
    %65 = arith.mulf %64, %63 : vector<16x84xf32>
    %c1_46 = arith.constant 1 : index
    %c0_47 = arith.constant 0 : index
    %66 = vector.load %arg4[%c1_46, %c0_47] : memref<28x84xf32, #tpu.memory_space<vmem>>, vector<16x84xf32>
    %cst_48 = arith.constant 0.0181670692 : f32
    %67 = vector.broadcast %cst_48 : f32 to vector<16x84xf32>
    %68 = arith.mulf %67, %66 : vector<16x84xf32>
    %69 = arith.addf %65, %68 : vector<16x84xf32>
    %c2_49 = arith.constant 2 : index
    %c0_50 = arith.constant 0 : index
    %70 = vector.load %arg4[%c2_49, %c0_50] : memref<28x84xf32, #tpu.memory_space<vmem>>, vector<16x84xf32>
    %cst_51 = arith.constant 0.019003259 : f32
    %71 = vector.broadcast %cst_51 : f32 to vector<16x84xf32>
    %72 = arith.mulf %71, %70 : vector<16x84xf32>
    %73 = arith.addf %69, %72 : vector<16x84xf32>
    %c3_52 = arith.constant 3 : index
    %c0_53 = arith.constant 0 : index
    %74 = vector.load %arg4[%c3_52, %c0_53] : memref<28x84xf32, #tpu.memory_space<vmem>>, vector<16x84xf32>
    %cst_54 = arith.constant 0.0196801499 : f32
    %75 = vector.broadcast %cst_54 : f32 to vector<16x84xf32>
    %76 = arith.mulf %75, %74 : vector<16x84xf32>
    %77 = arith.addf %73, %76 : vector<16x84xf32>
    %c4_55 = arith.constant 4 : index
    %c0_56 = arith.constant 0 : index
    %78 = vector.load %arg4[%c4_55, %c0_56] : memref<28x84xf32, #tpu.memory_space<vmem>>, vector<16x84xf32>
    %cst_57 = arith.constant 0.0201783553 : f32
    %79 = vector.broadcast %cst_57 : f32 to vector<16x84xf32>
    %80 = arith.mulf %79, %78 : vector<16x84xf32>
    %81 = arith.addf %77, %80 : vector<16x84xf32>
    %c5_58 = arith.constant 5 : index
    %c0_59 = arith.constant 0 : index
    %82 = vector.load %arg4[%c5_58, %c0_59] : memref<28x84xf32, #tpu.memory_space<vmem>>, vector<16x84xf32>
    %cst_60 = arith.constant 0.0204833131 : f32
    %83 = vector.broadcast %cst_60 : f32 to vector<16x84xf32>
    %84 = arith.mulf %83, %82 : vector<16x84xf32>
    %85 = arith.addf %81, %84 : vector<16x84xf32>
    %c6_61 = arith.constant 6 : index
    %c0_62 = arith.constant 0 : index
    %86 = vector.load %arg4[%c6_61, %c0_62] : memref<28x84xf32, #tpu.memory_space<vmem>>, vector<16x84xf32>
    %cst_63 = arith.constant 0.0205859859 : f32
    %87 = vector.broadcast %cst_63 : f32 to vector<16x84xf32>
    %88 = arith.mulf %87, %86 : vector<16x84xf32>
    %89 = arith.addf %85, %88 : vector<16x84xf32>
    %c7_64 = arith.constant 7 : index
    %c0_65 = arith.constant 0 : index
    %90 = vector.load %arg4[%c7_64, %c0_65] : memref<28x84xf32, #tpu.memory_space<vmem>>, vector<16x84xf32>
    %cst_66 = arith.constant 0.0204833131 : f32
    %91 = vector.broadcast %cst_66 : f32 to vector<16x84xf32>
    %92 = arith.mulf %91, %90 : vector<16x84xf32>
    %93 = arith.addf %89, %92 : vector<16x84xf32>
    %c8_67 = arith.constant 8 : index
    %c0_68 = arith.constant 0 : index
    %94 = vector.load %arg4[%c8_67, %c0_68] : memref<28x84xf32, #tpu.memory_space<vmem>>, vector<16x84xf32>
    %cst_69 = arith.constant 0.0201783553 : f32
    %95 = vector.broadcast %cst_69 : f32 to vector<16x84xf32>
    %96 = arith.mulf %95, %94 : vector<16x84xf32>
    %97 = arith.addf %93, %96 : vector<16x84xf32>
    %c9_70 = arith.constant 9 : index
    %c0_71 = arith.constant 0 : index
    %98 = vector.load %arg4[%c9_70, %c0_71] : memref<28x84xf32, #tpu.memory_space<vmem>>, vector<16x84xf32>
    %cst_72 = arith.constant 0.0196801499 : f32
    %99 = vector.broadcast %cst_72 : f32 to vector<16x84xf32>
    %100 = arith.mulf %99, %98 : vector<16x84xf32>
    %101 = arith.addf %97, %100 : vector<16x84xf32>
    %c10_73 = arith.constant 10 : index
    %c0_74 = arith.constant 0 : index
    %102 = vector.load %arg4[%c10_73, %c0_74] : memref<28x84xf32, #tpu.memory_space<vmem>>, vector<16x84xf32>
    %cst_75 = arith.constant 0.019003259 : f32
    %103 = vector.broadcast %cst_75 : f32 to vector<16x84xf32>
    %104 = arith.mulf %103, %102 : vector<16x84xf32>
    %105 = arith.addf %101, %104 : vector<16x84xf32>
    %c11_76 = arith.constant 11 : index
    %c0_77 = arith.constant 0 : index
    %106 = vector.load %arg4[%c11_76, %c0_77] : memref<28x84xf32, #tpu.memory_space<vmem>>, vector<16x84xf32>
    %cst_78 = arith.constant 0.0181670692 : f32
    %107 = vector.broadcast %cst_78 : f32 to vector<16x84xf32>
    %108 = arith.mulf %107, %106 : vector<16x84xf32>
    %109 = arith.addf %105, %108 : vector<16x84xf32>
    %c12_79 = arith.constant 12 : index
    %c0_80 = arith.constant 0 : index
    %110 = vector.load %arg4[%c12_79, %c0_80] : memref<28x84xf32, #tpu.memory_space<vmem>>, vector<16x84xf32>
    %cst_81 = arith.constant 0.0171948597 : f32
    %111 = vector.broadcast %cst_81 : f32 to vector<16x84xf32>
    %112 = arith.mulf %111, %110 : vector<16x84xf32>
    %113 = arith.addf %109, %112 : vector<16x84xf32>
    %c0_82 = arith.constant 0 : index
    %c0_83 = arith.constant 0 : index
    %c0_84 = arith.constant 0 : index
    %114 = vector.load %arg1[%c0_82, %c0_83, %c0_84] : memref<3x16x16xf32, #tpu.memory_space<vmem>>, vector<1x16x16xf32>
    %115 = vector.shape_cast %114 : vector<1x16x16xf32> to vector<16x16xf32>
    %116 = vector.extract_strided_slice %113 {offsets = [0, 6], sizes = [16, 16], strides = [1, 1]} : vector<16x84xf32> to vector<16x16xf32>
    %117 = arith.subf %115, %116 : vector<16x16xf32>
    %c0_85 = arith.constant 0 : index
    %c0_86 = arith.constant 0 : index
    %c0_87 = arith.constant 0 : index
    %118 = vector.load %arg2[%c0_85, %c0_86, %c0_87] : memref<3x16x16xf32, #tpu.memory_space<vmem>>, vector<1x16x16xf32>
    %119 = vector.shape_cast %118 : vector<1x16x16xf32> to vector<16x16xf32>
    %120 = vector.shape_cast %117 : vector<16x16xf32> to vector<1x16x16xf32>
    tpu.vector_store %arg2[%c0_85, %c0_86, %c0_87], %120 {strides = array<i32>} : memref<3x16x16xf32, #tpu.memory_space<vmem>>, vector<1x16x16xf32>,
    %c1_88 = arith.constant 1 : index
    %c0_89 = arith.constant 0 : index
    %c0_90 = arith.constant 0 : index
    %121 = vector.load %arg1[%c1_88, %c0_89, %c0_90] : memref<3x16x16xf32, #tpu.memory_space<vmem>>, vector<1x16x16xf32>
    %122 = vector.shape_cast %121 : vector<1x16x16xf32> to vector<16x16xf32>
    %123 = vector.extract_strided_slice %113 {offsets = [0, 34], sizes = [16, 16], strides = [1, 1]} : vector<16x84xf32> to vector<16x16xf32>
    %124 = arith.subf %122, %123 : vector<16x16xf32>
    %c1_91 = arith.constant 1 : index
    %c0_92 = arith.constant 0 : index
    %c0_93 = arith.constant 0 : index
    %125 = vector.load %arg2[%c1_91, %c0_92, %c0_93] : memref<3x16x16xf32, #tpu.memory_space<vmem>>, vector<1x16x16xf32>
    %126 = vector.shape_cast %125 : vector<1x16x16xf32> to vector<16x16xf32>
    %127 = vector.shape_cast %124 : vector<16x16xf32> to vector<1x16x16xf32>
    tpu.vector_store %arg2[%c1_91, %c0_92, %c0_93], %127 {strides = array<i32>} : memref<3x16x16xf32, #tpu.memory_space<vmem>>, vector<1x16x16xf32>,
    %c2_94 = arith.constant 2 : index
    %c0_95 = arith.constant 0 : index
    %c0_96 = arith.constant 0 : index
    %128 = vector.load %arg1[%c2_94, %c0_95, %c0_96] : memref<3x16x16xf32, #tpu.memory_space<vmem>>, vector<1x16x16xf32>
    %129 = vector.shape_cast %128 : vector<1x16x16xf32> to vector<16x16xf32>
    %130 = vector.extract_strided_slice %113 {offsets = [0, 62], sizes = [16, 16], strides = [1, 1]} : vector<16x84xf32> to vector<16x16xf32>
    %131 = arith.subf %129, %130 : vector<16x16xf32>
    %c2_97 = arith.constant 2 : index
    %c0_98 = arith.constant 0 : index
    %c0_99 = arith.constant 0 : index
    %132 = vector.load %arg2[%c2_97, %c0_98, %c0_99] : memref<3x16x16xf32, #tpu.memory_space<vmem>>, vector<1x16x16xf32>
    %133 = vector.shape_cast %132 : vector<1x16x16xf32> to vector<16x16xf32>
    %134 = vector.shape_cast %131 : vector<16x16xf32> to vector<1x16x16xf32>
    tpu.vector_store %arg2[%c2_97, %c0_98, %c0_99], %134 {strides = array<i32>} : memref<3x16x16xf32, #tpu.memory_space<vmem>>, vector<1x16x16xf32>,
    return
  }
  func.func @transform_0(%arg0: i32) -> (i32, i32, i32) {
    %c0_i32 = arith.constant 0 : i32
    %c0_i32_0 = arith.constant 0 : i32
    %c0_i32_1 = arith.constant 0 : i32
    return %arg0, %c0_i32, %c0_i32_0 : i32, i32, i32
  }
  func.func @transform_1(%arg0: i32) -> (i32, i32, i32) {
    %c0_i32 = arith.constant 0 : i32
    %c0_i32_0 = arith.constant 0 : i32
    %c0_i32_1 = arith.constant 0 : i32
    return %arg0, %c0_i32, %c0_i32_0 : i32, i32, i32
  }
}

</mosaic_0001>

<llo_original>
// kernel: tpu_custom_call.1
$region0: #{tpu_custom_call.1}
  #allocation0 [shape = 'u32[]', space=smem, size = 0x4, offset = 0x4, fixed_abs, tag = 'smem constant byte address 0x4 - core index']
  #allocation1 [shape = 'u32[144,128]{1,0:T(1,128)}', space=vmem, size = 0x12000, scoped, tag = 'internal scratch']
  #allocation2 [shape = 'f32[28,96]{1,0:T(8,128)}', space=vmem, size = 0x4000, scoped, tag = 'scratch operand']
  #allocation3 [shape = 'f32[28,84]{1,0:T(8,128)}', space=vmem, size = 0x4000, scoped, tag = 'scratch operand']
  %s0 = inlined_call_operand.hbm [shape: f32[6,16,16], index: 0, kind: input, shape index: {}]
  %s1 = inlined_call_operand.hbm [shape: f32[6,16,16], index: 1, kind: output, shape index: {}]
  %s2 = sld [smem:[#allocation0]]
  $region41: #{tpu_custom_call.1} parent=0
    _
  %s4 = ssub.s32 1, %s2
  %s5 = scalar_select 0, %s4, %s2
  $region1: #{tpu_custom_call.1} parent=0
    #allocation4 [shape = 'u8[49152]{0}', space=vmem, size = 0xc000, scoped, tag = 'input window, operand 0']
    #allocation5 [shape = 's32[2]{0}', space=sflag, size = 0x8, scoped, tag = 'scoped memory for tpu_custom_call.1']
    #allocation6 [shape = 's32[2]{0}', space=sflag, size = 0x8, scoped, tag = 'scoped memory for tpu_custom_call.1']
    #allocation7 [shape = 'u8[49152]{0}', space=vmem, size = 0xc000, scoped, tag = 'output window, operand 0']
    %6 = vsyncpa [#allocation5], 0
    %s7 = scalar_lea.sflag [#allocation5], 1
    %8 = vsyncpa %s7, 0
    %9 = vsyncpa [#allocation6], 0
    %s10 = scalar_lea.sflag [#allocation6], 1
    %11 = vsyncpa %s10, 0
    loop: start=0, step=1, limit=4
    $region2: #{tpu_custom_call.1} parent=1 // loop_pre_header
      _
    $region3: #{tpu_custom_call.1} parent=1 // loop_header
      %s13 = sphi 0, %s17
      %p14 = scmp.ge.s32.totalorder %s13, 4
      %s23 = sphi 0, %s25
      %s26 = sphi 0, %s23
      %s27 = sphi 0, %s26
      %s43 = sphi 0, %s27
      %s49 = sphi 0, %s51
      %s52 = sphi 0, %s49
      %s53 = sphi 0, %s52
      %s69 = sphi 0, %s53
    $region4: #{tpu_custom_call.1} parent=1 // loop_header_branch
      %16 = sbr.rel (%p14) target = $region8
    $region5: #{tpu_custom_call.1} parent=1 // loop_body
      %s18 = ssub.s32 %s13, 1
      %s19 = ssub.s32 %s13, 2
      %s20 = sadd.s32 %s13, 1
      %s21 = ssub.s32 %s13, %s20
      %p22 = scmp.eq.s32.totalorder %s21, 0
      %s24 = sadd.s32 %s23, 1
      %s25 = scalar_select %p22, %s23, %s24
      %p28 = pneg %p22
      %p29 = scmp.eq.s32.totalorder %s13, 1
      %p30 = por %p28, %p29
      %p31 = scmp.ne.s32.totalorder %s23, %s26
      %p32 = scmp.eq.s32.totalorder %s13, 0
      %p33 = por %p31, %p32
      %p34 = scmp.ne.s32.totalorder %s23, %s26
      %p35 = scmp.eq.s32.totalorder %s18, 1
      %p36 = por %p34, %p35
      %p37 = scmp.ne.s32.totalorder %s26, %s27
      %p38 = scmp.eq.s32.totalorder %s18, 0
      %p39 = por %p37, %p38
      %p40 = scmp.ne.s32.totalorder %s26, %s27
      %p41 = scmp.eq.s32.totalorder %s19, 1
      %p42 = por %p40, %p41
      %p44 = scmp.ne.s32.totalorder %s27, %s43
      %p45 = scmp.eq.s32.totalorder %s19, 0
      %p46 = por %p44, %p45
      %s47 = ssub.s32 %s13, %s20
      %p48 = scmp.eq.s32.totalorder %s47, 0
      %s50 = sadd.s32 %s49, 1
      %s51 = scalar_select %p48, %s49, %s50
      %p54 = pneg %p48
      %p55 = scmp.eq.s32.totalorder %s13, 1
      %p56 = por %p54, %p55
      %p57 = scmp.ne.s32.totalorder %s49, %s52
      %p58 = scmp.eq.s32.totalorder %s13, 0
      %p59 = por %p57, %p58
      %p60 = scmp.ne.s32.totalorder %s49, %s52
      %p61 = scmp.eq.s32.totalorder %s18, 1
      %p62 = por %p60, %p61
      %p63 = scmp.ne.s32.totalorder %s52, %s53
      %p64 = scmp.eq.s32.totalorder %s18, 0
      %p65 = por %p63, %p64
      %p66 = scmp.ne.s32.totalorder %s52, %s53
      %p67 = scmp.eq.s32.totalorder %s19, 1
      %p68 = por %p66, %p67
      %p70 = scmp.ne.s32.totalorder %s53, %s69
      %p71 = scmp.eq.s32.totalorder %s19, 0
      %p72 = por %p70, %p71
      %p73 = scmp.le.s32.totalorder 1, %s13
      %p74 = scmp.lt.s32.totalorder %s13, 3
      %p75 = pnand %p73, %p74
      %p76 = pneg %p75
      // Predicated region
      $region9: #{tpu_custom_call.1} parent=5 // pred_check
        _
      $region10: #{tpu_custom_call.1} parent=5 // pred_check_branch
        %78 = sbr.rel (%p75) target = $region12
      $region11: #{tpu_custom_call.1} parent=5 // pred_region
        %s79 = ssub.s32 %s13, 1
      $region12: #{tpu_custom_call.1} parent=5 // pred_fallthru
        _
      %p80 = scmp.lt.s32.totalorder %s13, 2
      // Predicated region
      $region13: #{tpu_custom_call.1} parent=5 // pred_check
        %p81 = pneg %p80
      $region14: #{tpu_custom_call.1} parent=5 // pred_check_branch
        %83 = sbr.rel (%p81) target = $region16
      $region15: #{tpu_custom_call.1} parent=5 // pred_region
        // Predicated region
        $region17: #{tpu_custom_call.1} parent=15 // pred_check
          %p84 = pneg %p33
        $region18: #{tpu_custom_call.1} parent=15 // pred_check_branch
          %86 = sbr.rel (%p84) target = $region20
        $region19: #{tpu_custom_call.1} parent=15 // pred_region
          %s87 = sand.u32 %s23, 1
          %s88 = scalar_lea.sflag [#allocation5], %s87
          %s89 = sand.u32 %s23, 1
          %s90 = smul.addr %s89, 48
          %s91 = scalar_lea.vmem [#allocation4], %s90
          %s92 = smul.u32 3, %s13
          %s94 = ssub.s32 768, 768
          %95 = vsyncadd %s88, %s94
          %s96 = smul.addr %s92, 2
          %s97 = smul.addr %s96, 128
          %s98 = scalar_lea.hbm %s0, %s97
          %s99 = sshll.u32 %s91, 4
          %s100 = int_to_ptr.vmem [resolvable:$true] %s99
          %105 = dma.hbm_to_vmem [thread:$0]  %s98, 768, %s100, %s88, 128, 128, 8
        $region20: #{tpu_custom_call.1} parent=15 // pred_fallthru
          _
      $region16: #{tpu_custom_call.1} parent=5 // pred_fallthru
        _
      %p106 = scmp.le.s32.totalorder 1, %s13
      %p107 = scmp.lt.s32.totalorder %s13, 3
      %p108 = pnand %p106, %p107
      %p109 = pneg %p108
      // Predicated region
      $region21: #{tpu_custom_call.1} parent=5 // pred_check
        _
      $region22: #{tpu_custom_call.1} parent=5 // pred_check_branch
        %111 = sbr.rel (%p108) target = $region24
      $region23: #{tpu_custom_call.1} parent=5 // pred_region
        %s112 = ssub.s32 %s13, 1
        %s113 = sand.u32 %s26, 1
        %s114 = scalar_lea.sflag [#allocation5], %s113
        %s115 = sand.u32 %s26, 1
        %s116 = smul.addr %s115, 48
        %s117 = scalar_lea.vmem [#allocation4], %s116
        // Predicated region
        $region25: #{tpu_custom_call.1} parent=23 // pred_check
          %p118 = pneg %p39
        $region26: #{tpu_custom_call.1} parent=23 // pred_check_branch
          %120 = sbr.rel (%p118) target = $region28
        $region27: #{tpu_custom_call.1} parent=23 // pred_region
          %121 = dma.done %s114, 768
        $region28: #{tpu_custom_call.1} parent=23 // pred_fallthru
          _
        %s122 = sand.u32 %s26, 1
        %s123 = scalar_lea.sflag [#allocation5], %s122
        %s124 = sand.u32 %s26, 1
        %s125 = smul.addr %s124, 48
        %s126 = scalar_lea.vmem [#allocation4], %s125
        %p127 = pneg %p39
        %p128 = pneg %p36
        %p129 = pneg %p65
        %p130 = pneg %p62
        %s131 = sand.u32 %s52, 1
        %s132 = scalar_lea.sflag [#allocation6], %s131
        %s133 = sand.u32 %s52, 1
        %s134 = smul.addr %s133, 48
        %s135 = scalar_lea.vmem [#allocation7], %s134
        %s136 = smul.u32 3, %s18
        %s137 = smul.u32 3, %s18
        %vm138 = vcmask 785408
        %139 = vst.msk [vmem:[#allocation2] sm:$0xff] %vm138, 0.0
        %140 = vst.msk [vmem:[#allocation2 + $0x8] sm:$0xff] %vm138, 0.0
        %141 = vst.msk [vmem:[#allocation2 + $0x10] sm:$0xff] %vm138, 0.0
        %vm142 = vcmask 781312
        %143 = vst.msk [vmem:[#allocation2 + $0x18] sm:$0xf] %vm142, 0.0
        %v144 = vld [vmem:[%s117] sm:$0xff]
        %v145 = vld [vmem:[%s117 + $0x8] sm:$0xff]
        %148 = vrot.lane.b32.xlu0 %v144, 12
        %v149 = vpop.permute.xlu0 %148
        %150 = vrot.lane.b32.xlu0 %v145, 12
        %v151 = vpop.permute.xlu0 %150
        %vm154 = vcmask 228448
        %155 = vst.msk [vmem:[#allocation2 + $0x6] sm:$0xff] %vm154, %v149
        %156 = vst.msk [vmem:[#allocation2 + $0xe] sm:$0xff] %vm154, %v151
        %s157 = scalar_lea.vmem %s117, 16 [#allocation4]
        %v158 = vld [vmem:[%s157] sm:$0xff]
        %v159 = vld [vmem:[%s157 + $0x8] sm:$0xff]
        %162 = vrot.lane.b32.xlu0 %v158, 40
        %v163 = vpop.permute.xlu0 %162
        %164 = vrot.lane.b32.xlu0 %v159, 40
        %v165 = vpop.permute.xlu0 %164
        %vm168 = vcmask 458048
        %169 = vst.msk [vmem:[#allocation2 + $0x6] sm:$0xff] %vm168, %v163
        %170 = vst.msk [vmem:[#allocation2 + $0xe] sm:$0xff] %vm168, %v165
        %s171 = scalar_lea.vmem %s117, 32 [#allocation4]
        %v172 = vld [vmem:[%s171] sm:$0xff]
        %v173 = vld [vmem:[%s171 + $0x8] sm:$0xff]
        %176 = vrot.lane.b32.xlu0 %v172, 68
        %v177 = vpop.permute.xlu0 %176
        %178 = vrot.lane.b32.xlu0 %v173, 68
        %v179 = vpop.permute.xlu0 %178
        %vm182 = vcmask 687648
        %183 = vst.msk [vmem:[#allocation2 + $0x6] sm:$0xff] %vm182, %v177
        %184 = vst.msk [vmem:[#allocation2 + $0xe] sm:$0xff] %vm182, %v179
        %v185 = vld [vmem:[#allocation2] sm:$0xff]
        %v186 = vld [vmem:[#allocation2 + $0x8] sm:$0xff]
        %v187 = vld [vmem:[#allocation2 + $0x10] sm:$0xff]
        %v188 = vld [vmem:[#allocation2 + $0x18] sm:$0xf]
        %v189 = vmul.f32 %v185, 0.06877944
        %v190 = vmul.f32 %v186, 0.06877944
        %v191 = vmul.f32 %v187, 0.06877944
        %v192 = vmul.f32 %v188, 0.06877944
        %v193 = vmul.f32 %v185, 0.07266828
        %v194 = vmul.f32 %v186, 0.07266828
        %v195 = vmul.f32 %v187, 0.07266828
        %v196 = vmul.f32 %v188, 0.07266828
        %201 = vrot.lane.b32.xlu0 %v193, 127
        %v202 = vpop.permute.xlu0 %201
        %203 = vrot.lane.b32.xlu0 %v194, 127
        %v204 = vpop.permute.xlu0 %203
        %205 = vrot.lane.b32.xlu0 %v195, 127
        %v206 = vpop.permute.xlu0 %205
        %207 = vrot.lane.b32.xlu0 %v196, 127
        %v208 = vpop.permute.xlu0 %207
        %v213 = vadd.f32 %v189, %v202
        %v214 = vadd.f32 %v190, %v204
        %v215 = vadd.f32 %v191, %v206
        %v216 = vadd.f32 %v192, %v208
        %v217 = vmul.f32 %v185, 0.076013036
        %v218 = vmul.f32 %v186, 0.076013036
        %v219 = vmul.f32 %v187, 0.076013036
        %v220 = vmul.f32 %v188, 0.076013036
        %225 = vrot.lane.b32.xlu0 %v217, 126
        %v226 = vpop.permute.xlu0 %225
        %227 = vrot.lane.b32.xlu0 %v218, 126
        %v228 = vpop.permute.xlu0 %227
        %229 = vrot.lane.b32.xlu0 %v219, 126
        %v230 = vpop.permute.xlu0 %229
        %231 = vrot.lane.b32.xlu0 %v220, 126
        %v232 = vpop.permute.xlu0 %231
        %v237 = vadd.f32 %v213, %v226
        %v238 = vadd.f32 %v214, %v228
        %v239 = vadd.f32 %v215, %v230
        %v240 = vadd.f32 %v216, %v232
        %v241 = vmul.f32 %v185, 0.0787206
        %v242 = vmul.f32 %v186, 0.0787206
        %v243 = vmul.f32 %v187, 0.0787206
        %v244 = vmul.f32 %v188, 0.0787206
        %249 = vrot.lane.b32.xlu0 %v241, 125
        %v250 = vpop.permute.xlu0 %249
        %251 = vrot.lane.b32.xlu0 %v242, 125
        %v252 = vpop.permute.xlu0 %251
        %253 = vrot.lane.b32.xlu0 %v243, 125
        %v254 = vpop.permute.xlu0 %253
        %255 = vrot.lane.b32.xlu0 %v244, 125
        %v256 = vpop.permute.xlu0 %255
        %v261 = vadd.f32 %v237, %v250
        %v262 = vadd.f32 %v238, %v252
        %v263 = vadd.f32 %v239, %v254
        %v264 = vadd.f32 %v240, %v256
        %v265 = vmul.f32 %v185, 0.08071342
        %v266 = vmul.f32 %v186, 0.08071342
        %v267 = vmul.f32 %v187, 0.08071342
        %v268 = vmul.f32 %v188, 0.08071342
        %273 = vrot.lane.b32.xlu0 %v265, 124
        %v274 = vpop.permute.xlu0 %273
        %275 = vrot.lane.b32.xlu0 %v266, 124
        %v276 = vpop.permute.xlu0 %275
        %277 = vrot.lane.b32.xlu0 %v267, 124
        %v278 = vpop.permute.xlu0 %277
        %279 = vrot.lane.b32.xlu0 %v268, 124
        %v280 = vpop.permute.xlu0 %279
        %v285 = vadd.f32 %v261, %v274
        %v286 = vadd.f32 %v262, %v276
        %v287 = vadd.f32 %v263, %v278
        %v288 = vadd.f32 %v264, %v280
        %v289 = vmul.f32 %v185, 0.08193325
        %v290 = vmul.f32 %v186, 0.08193325
        %v291 = vmul.f32 %v187, 0.08193325
        %v292 = vmul.f32 %v188, 0.08193325
        %297 = vrot.lane.b32.xlu0 %v289, 123
        %v298 = vpop.permute.xlu0 %297
        %299 = vrot.lane.b32.xlu0 %v290, 123
        %v300 = vpop.permute.xlu0 %299
        %301 = vrot.lane.b32.xlu0 %v291, 123
        %v302 = vpop.permute.xlu0 %301
        %303 = vrot.lane.b32.xlu0 %v292, 123
        %v304 = vpop.permute.xlu0 %303
        %v309 = vadd.f32 %v285, %v298
        %v310 = vadd.f32 %v286, %v300
        %v311 = vadd.f32 %v287, %v302
        %v312 = vadd.f32 %v288, %v304
        %v313 = vmul.f32 %v185, 0.08234394
        %v314 = vmul.f32 %v186, 0.08234394
        %v315 = vmul.f32 %v187, 0.08234394
        %v316 = vmul.f32 %v188, 0.08234394
        %321 = vrot.lane.b32.xlu0 %v313, 122
        %v322 = vpop.permute.xlu0 %321
        %323 = vrot.lane.b32.xlu0 %v314, 122
        %v324 = vpop.permute.xlu0 %323
        %325 = vrot.lane.b32.xlu0 %v315, 122
        %v326 = vpop.permute.xlu0 %325
        %327 = vrot.lane.b32.xlu0 %v316, 122
        %v328 = vpop.permute.xlu0 %327
        %v333 = vadd.f32 %v309, %v322
        %v334 = vadd.f32 %v310, %v324
        %v335 = vadd.f32 %v311, %v326
        %v336 = vadd.f32 %v312, %v328
        %337 = vrot.lane.b32.xlu0 %v289, 121
        %v338 = vpop.permute.xlu0 %337
        %339 = vrot.lane.b32.xlu0 %v290, 121
        %v340 = vpop.permute.xlu0 %339
        %341 = vrot.lane.b32.xlu0 %v291, 121
        %v342 = vpop.permute.xlu0 %341
        %343 = vrot.lane.b32.xlu0 %v292, 121
        %v344 = vpop.permute.xlu0 %343
        %v349 = vadd.f32 %v333, %v338
        %v350 = vadd.f32 %v334, %v340
        %v351 = vadd.f32 %v335, %v342
        %v352 = vadd.f32 %v336, %v344
        %353 = vrot.lane.b32.xlu0 %v265, 120
        %v354 = vpop.permute.xlu0 %353
        %355 = vrot.lane.b32.xlu0 %v266, 120
        %v356 = vpop.permute.xlu0 %355
        %357 = vrot.lane.b32.xlu0 %v267, 120
        %v358 = vpop.permute.xlu0 %357
        %359 = vrot.lane.b32.xlu0 %v268, 120
        %v360 = vpop.permute.xlu0 %359
        %v365 = vadd.f32 %v349, %v354
        %v366 = vadd.f32 %v350, %v356
        %v367 = vadd.f32 %v351, %v358
        %v368 = vadd.f32 %v352, %v360
        %369 = vrot.lane.b32.xlu0 %v241, 119
        %v370 = vpop.permute.xlu0 %369
        %371 = vrot.lane.b32.xlu0 %v242, 119
        %v372 = vpop.permute.xlu0 %371
        %373 = vrot.lane.b32.xlu0 %v243, 119
        %v374 = vpop.permute.xlu0 %373
        %375 = vrot.lane.b32.xlu0 %v244, 119
        %v376 = vpop.permute.xlu0 %375
        %v381 = vadd.f32 %v365, %v370
        %v382 = vadd.f32 %v366, %v372
        %v383 = vadd.f32 %v367, %v374
        %v384 = vadd.f32 %v368, %v376
        %385 = vrot.lane.b32.xlu0 %v217, 118
        %v386 = vpop.permute.xlu0 %385
        %387 = vrot.lane.b32.xlu0 %v218, 118
        %v388 = vpop.permute.xlu0 %387
        %389 = vrot.lane.b32.xlu0 %v219, 118
        %v390 = vpop.permute.xlu0 %389
        %391 = vrot.lane.b32.xlu0 %v220, 118
        %v392 = vpop.permute.xlu0 %391
        %v397 = vadd.f32 %v381, %v386
        %v398 = vadd.f32 %v382, %v388
        %v399 = vadd.f32 %v383, %v390
        %v400 = vadd.f32 %v384, %v392
        %401 = vrot.lane.b32.xlu0 %v193, 117
        %v402 = vpop.permute.xlu0 %401
        %403 = vrot.lane.b32.xlu0 %v194, 117
        %v404 = vpop.permute.xlu0 %403
        %405 = vrot.lane.b32.xlu0 %v195, 117
        %v406 = vpop.permute.xlu0 %405
        %407 = vrot.lane.b32.xlu0 %v196, 117
        %v408 = vpop.permute.xlu0 %407
        %v413 = vadd.f32 %v397, %v402
        %v414 = vadd.f32 %v398, %v404
        %v415 = vadd.f32 %v399, %v406
        %v416 = vadd.f32 %v400, %v408
        %421 = vrot.lane.b32.xlu0 %v189, 116
        %v422 = vpop.permute.xlu0 %421
        %423 = vrot.lane.b32.xlu0 %v190, 116
        %v424 = vpop.permute.xlu0 %423
        %425 = vrot.lane.b32.xlu0 %v191, 116
        %v426 = vpop.permute.xlu0 %425
        %427 = vrot.lane.b32.xlu0 %v192, 116
        %v428 = vpop.permute.xlu0 %427
        %v433 = vadd.f32 %v413, %v422
        %v434 = vadd.f32 %v414, %v424
        %v435 = vadd.f32 %v415, %v426
        %v436 = vadd.f32 %v416, %v428
        %vm437 = vcmask 687104
        %438 = vst.msk [vmem:[#allocation3] sm:$0xff] %vm437, %v433
        %439 = vst.msk [vmem:[#allocation3 + $0x8] sm:$0xff] %vm437, %v434
        %440 = vst.msk [vmem:[#allocation3 + $0x10] sm:$0xff] %vm437, %v435
        %vm441 = vcmask 683008
        %442 = vst.msk [vmem:[#allocation3 + $0x18] sm:$0xf] %vm441, %v436
        %v443 = vld [vmem:[#allocation3] sm:$0xff]
        %v444 = vld [vmem:[#allocation3 + $0x8] sm:$0xff]
        %v445 = vmul.f32 %v443, 0.01719486
        %v446 = vmul.f32 %v444, 0.01719486
        %v447 = vld [vmem:[#allocation3 + $0x1] sm:$0xff]
        %v448 = vld [vmem:[#allocation3 + $0x9] sm:$0xff]
        %v449 = vmul.f32 %v447, 0.01816707
        %v450 = vmul.f32 %v448, 0.01816707
        %v451 = vadd.f32 %v445, %v449
        %v452 = vadd.f32 %v446, %v450
        %v453 = vld [vmem:[#allocation3 + $0x2] sm:$0xff]
        %v454 = vld [vmem:[#allocation3 + $0xa] sm:$0xff]
        %v455 = vmul.f32 %v453, 0.019003259
        %v456 = vmul.f32 %v454, 0.019003259
        %v457 = vadd.f32 %v451, %v455
        %v458 = vadd.f32 %v452, %v456
        %v459 = vld [vmem:[#allocation3 + $0x3] sm:$0xff]
        %v460 = vld [vmem:[#allocation3 + $0xb] sm:$0xff]
        %v461 = vmul.f32 %v459, 0.01968015
        %v462 = vmul.f32 %v460, 0.01968015
        %v463 = vadd.f32 %v457, %v461
        %v464 = vadd.f32 %v458, %v462
        %v465 = vld [vmem:[#allocation3 + $0x4] sm:$0xff]
        %v466 = vld [vmem:[#allocation3 + $0xc] sm:$0xff]
        %v467 = vmul.f32 %v465, 0.020178355
        %v468 = vmul.f32 %v466, 0.020178355
        %v469 = vadd.f32 %v463, %v467
        %v470 = vadd.f32 %v464, %v468
        %v471 = vld [vmem:[#allocation3 + $0x5] sm:$0xff]
        %v472 = vld [vmem:[#allocation3 + $0xd] sm:$0xff]
        %v473 = vmul.f32 %v471, 0.020483313
        %v474 = vmul.f32 %v472, 0.020483313
        %v475 = vadd.f32 %v469, %v473
        %v476 = vadd.f32 %v470, %v474
        %v477 = vld [vmem:[#allocation3 + $0x6] sm:$0xff]
        %v478 = vld [vmem:[#allocation3 + $0xe] sm:$0xff]
        %v479 = vmul.f32 %v477, 0.020585986
        %v480 = vmul.f32 %v478, 0.020585986
        %v481 = vadd.f32 %v475, %v479
        %v482 = vadd.f32 %v476, %v480
        %v483 = vld [vmem:[#allocation3 + $0x7] sm:$0xff]
        %v484 = vld [vmem:[#allocation3 + $0xf] sm:$0xff]
        %v485 = vmul.f32 %v483, 0.020483313
        %v486 = vmul.f32 %v484, 0.020483313
        %v487 = vadd.f32 %v481, %v485
        %v488 = vadd.f32 %v482, %v486
        %v489 = vld [vmem:[#allocation3 + $0x10] sm:$0xff]
        %v490 = vmul.f32 %v444, 0.020178355
        %v491 = vmul.f32 %v489, 0.020178355
        %v492 = vadd.f32 %v487, %v490
        %v493 = vadd.f32 %v488, %v491
        %v494 = vld [vmem:[#allocation3 + $0x11] sm:$0xff]
        %v495 = vmul.f32 %v448, 0.01968015
        %v496 = vmul.f32 %v494, 0.01968015
        %v497 = vadd.f32 %v492, %v495
        %v498 = vadd.f32 %v493, %v496
        %v499 = vld [vmem:[#allocation3 + $0x12] sm:$0xff]
        %v500 = vmul.f32 %v499, 0.019003259
        %v501 = vadd.f32 %v497, %v456
        %v502 = vadd.f32 %v498, %v500
        %v503 = vld [vmem:[#allocation3 + $0x13] sm:$0xff]
        %v504 = vmul.f32 %v460, 0.01816707
        %v505 = vmul.f32 %v503, 0.01816707
        %v506 = vadd.f32 %v501, %v504
        %v507 = vadd.f32 %v502, %v505
        %v508 = vld [vmem:[#allocation3 + $0x14] sm:$0xff]
        %v509 = vmul.f32 %v466, 0.01719486
        %v510 = vmul.f32 %v508, 0.01719486
        %v511 = vadd.f32 %v506, %v509
        %v512 = vadd.f32 %v507, %v510
        %v513 = vld [vmem:[%s117] sm:$0xff]
        %v514 = vld [vmem:[%s117 + $0x8] sm:$0xff]
        %517 = vrot.lane.b32.xlu0 %v511, 122
        %v518 = vpop.permute.xlu0 %517
        %519 = vrot.lane.b32.xlu0 %v512, 122
        %v520 = vpop.permute.xlu0 %519
        %v523 = vsub.f32 %v513, %v518
        %v524 = vsub.f32 %v514, %v520
        %vm525 = vcmask 130048
        %526 = vst.msk [vmem:[%s135] sm:$0xff] %vm525, %v523
        %527 = vst.msk [vmem:[%s135 + $0x8] sm:$0xff] %vm525, %v524
        %v528 = vld [vmem:[%s157] sm:$0xff]
        %v529 = vld [vmem:[%s157 + $0x8] sm:$0xff]
        %530 = vrot.lane.b32.xlu0 %v511, 94
        %v531 = vpop.permute.xlu0 %530
        %532 = vrot.lane.b32.xlu0 %v512, 94
        %v533 = vpop.permute.xlu0 %532
        %v536 = vsub.f32 %v528, %v531
        %v537 = vsub.f32 %v529, %v533
        %s538 = scalar_lea.vmem %s135, 16 [#allocation7]
        %539 = vst.msk [vmem:[%s538] sm:$0xff] %vm525, %v536
        %540 = vst.msk [vmem:[%s538 + $0x8] sm:$0xff] %vm525, %v537
        %v541 = vld [vmem:[%s171] sm:$0xff]
        %v542 = vld [vmem:[%s171 + $0x8] sm:$0xff]
        %543 = vrot.lane.b32.xlu0 %v511, 66
        %v544 = vpop.permute.xlu0 %543
        %545 = vrot.lane.b32.xlu0 %v512, 66
        %v546 = vpop.permute.xlu0 %545
        %v549 = vsub.f32 %v541, %v544
        %v550 = vsub.f32 %v542, %v546
        %s551 = scalar_lea.vmem %s135, 32 [#allocation7]
        %552 = vst.msk [vmem:[%s551] sm:$0xff] %vm525, %v549
        %553 = vst.msk [vmem:[%s551 + $0x8] sm:$0xff] %vm525, %v550
        %s554 = sand.u32 %s52, 1
        %s555 = scalar_lea.sflag [#allocation6], %s554
        %s556 = sand.u32 %s52, 1
        %s557 = smul.addr %s556, 48
        %s558 = scalar_lea.vmem [#allocation7], %s557
        // Predicated region
        $region29: #{tpu_custom_call.1} parent=23 // pred_check
          %p559 = pneg %p62
        $region30: #{tpu_custom_call.1} parent=23 // pred_check_branch
          %561 = sbr.rel (%p559) target = $region32
        $region31: #{tpu_custom_call.1} parent=23 // pred_region
          %s562 = smul.u32 3, %s18
          %s564 = ssub.s32 768, 768
          %565 = vsyncadd %s555, %s564
          %s566 = smul.addr %s562, 2
          %s567 = smul.addr %s566, 128
          %s568 = scalar_lea.hbm %s1, %s567
          %s569 = sshll.u32 %s558, 4
          %s570 = int_to_ptr.vmem [resolvable:$true] %s569
          %575 = dma.vmem_to_hbm [thread:$0]  %s570, 768, %s568, %s555, 128, 128, 8
        $region32: #{tpu_custom_call.1} parent=23 // pred_fallthru
          _
      $region24: #{tpu_custom_call.1} parent=5 // pred_fallthru
        _
      %p576 = scmp.le.s32.totalorder 2, %s13
      // Predicated region
      $region33: #{tpu_custom_call.1} parent=5 // pred_check
        %p577 = pneg %p576
      $region34: #{tpu_custom_call.1} parent=5 // pred_check_branch
        %579 = sbr.rel (%p577) target = $region36
      $region35: #{tpu_custom_call.1} parent=5 // pred_region
        %s580 = ssub.s32 %s13, 2
        // Predicated region
        $region37: #{tpu_custom_call.1} parent=35 // pred_check
          %p581 = pneg %p68
        $region38: #{tpu_custom_call.1} parent=35 // pred_check_branch
          %583 = sbr.rel (%p581) target = $region40
        $region39: #{tpu_custom_call.1} parent=35 // pred_region
          %s584 = sand.u32 %s53, 1
          %s585 = scalar_lea.sflag [#allocation6], %s584
          %s586 = sand.u32 %s53, 1
          %s587 = smul.addr %s586, 48
          %s588 = scalar_lea.vmem [#allocation7], %s587
          %589 = dma.done %s585, 768
        $region40: #{tpu_custom_call.1} parent=35 // pred_fallthru
          _
      $region36: #{tpu_custom_call.1} parent=5 // pred_fallthru
        _
    $region6: #{tpu_custom_call.1} parent=1 // loop_footer
      %s17 = sadd.s32 1, %s13
    $region7: #{tpu_custom_call.1} parent=1 // loop_footer_branch
      %12 = sbr.rel target = $region3
    $region8: #{tpu_custom_call.1} parent=1 // loop_exit
      _
    %590 = vsyncpa [#allocation5], 1
    %s591 = scalar_lea.sflag [#allocation5], 1
    %592 = vsyncpa %s591, 1
    %593 = vsyncpa [#allocation6], 1
    %s594 = scalar_lea.sflag [#allocation6], 1
    %595 = vsyncpa %s594, 1

</llo_original>
